<compile_context>
chip_gen: v6e
topology: v6e:2x2x1
jax: 0.10.0
libtpu: 0.0.40
codegen_flags: <defaults>
</compile_context>

<pallas_src>
import functools

import jax
import jax.numpy as jnp
from jax.experimental import pallas as pl
from jax.experimental.pallas import tpu as pltpu


def _circular_pad_kernel(x_ref, o_ref, *, ph: int, pw: int):
    """x_ref: (B, H, W)  ->  o_ref: (B, H + 2*ph, W + 2*pw), 'wrap' padding."""
    _, H, W = x_ref.shape
    x = x_ref[...]  # one full load; everything else happens in-register

    # Wrap along W: (B, H, W) -> (B, H, W + 2*pw).
    if pw > 0:
        x = jnp.concatenate([x[:, :, W - pw:W], x, x[:, :, 0:pw]], axis=2)

    # Wrap along H on the already W-padded rows: (B, H, Wo) -> (B, Ho, Wo).
    if ph > 0:
        x = jnp.concatenate([x[:, H - ph:H, :], x, x[:, 0:ph, :]], axis=1)

    # Single dense, fully aligned store of the whole output block.
    o_ref[...] = x


def _padded_plane_bytes(H: int, W: int, Ho: int, Wo: int, itemsize: int) -> int:
    """Physical VMEM bytes of one (H,W) input plane + one (Ho,Wo) output plane,
    accounting for (sublane, 128-lane) tile padding."""
    sublane = max(1, 32 // itemsize)  # 8 for f32, 16 for bf16, 32 for int8

    def rup(v, m):
        return ((v + m - 1) // m) * m

    in_b = rup(H, sublane) * rup(W, 128) * itemsize
    out_b = rup(Ho, sublane) * rup(Wo, 128) * itemsize
    return in_b + out_b


def _choose_batch(nc: int, per_plane_padded_bytes: int,
                  block_budget_bytes: int = 8 << 20,
                  min_grid_steps: int = 8) -> int:
    """Planes per grid step.

    Keep the (in + out) block within ~8 MiB of *physical* VMEM (double-buffered
    by the pipeline -> ~16 MiB, plus an in-register/VMEM temp, comfortably
    under the 32 MiB scoped limit even on v7x), and keep >= min_grid_steps
    grid steps so each TensorCore sees >= ~4 blocks in flight.
    """
    b_vmem = max(1, block_budget_bytes // per_plane_padded_bytes)
    b_depth = max(1, nc // min_grid_steps)
    return int(max(1, min(b_vmem, b_depth, nc)))


def circular_padding_2d(x: jax.Array, padding) -> jax.Array:
    """Pallas equivalent of CircularPadding2d(padding)(x) for NCHW x."""
    if isinstance(padding, int):
        ph = pw = padding
    else:
        assert len(padding) == 2
        ph, pw = padding  # Conv2d order: (pad_H, pad_W)

    N, C, H, W = x.shape
    assert 0 <= ph <= H and 0 <= pw <= W, "circular padding must not exceed input size"

    Ho, Wo = H + 2 * ph, W + 2 * pw
    NC = N * C
    x_flat = x.reshape(NC, H, W)

    itemsize = jnp.dtype(x.dtype).itemsize
    per_plane_padded = _padded_plane_bytes(H, W, Ho, Wo, itemsize)
    B = _choose_batch(NC, per_plane_padded)
    grid = (pl.cdiv(NC, B),)

    kernel = functools.partial(_circular_pad_kernel, ph=ph, pw=pw)

    cost = pl.CostEstimate(
        flops=0,
        transcendentals=0,
        bytes_accessed=NC * (H * W + Ho * Wo) * itemsize,
    )

    out_flat = pl.pallas_call(
        kernel,
        out_shape=jax.ShapeDtypeStruct((NC, Ho, Wo), x.dtype),
        grid_spec=pltpu.PrefetchScalarGridSpec(
            num_scalar_prefetch=0,
            grid=grid,
            in_specs=[pl.BlockSpec((B, H, W), lambda i: (i, 0, 0))],
            out_specs=pl.BlockSpec((B, Ho, Wo), lambda i: (i, 0, 0)),
        ),
        compiler_params=pltpu.CompilerParams(
            dimension_semantics=("parallel",),
            vmem_limit_bytes=32 << 20,
        ),
        cost_estimate=cost,
    )(x_flat)

    return out_flat.reshape(N, C, Ho, Wo)


if __name__ == "__main__":
    key = jax.random.PRNGKey(0)
    N, C, H, W = 2, 4, 16, 16
    x = jax.random.normal(key, (N, C, H, W), dtype=jnp.float32)

    # (pad_H, pad_W), Conv2d order.
    padding = (2, 3)
    out = jax.block_until_ready(circular_padding_2d(x, padding))

    ph, pw = padding
    ref = jnp.pad(x, ((0, 0), (0, 0), (ph, ph), (pw, pw)), mode="wrap")
    assert out.shape == (N, C, H + 2 * ph, W + 2 * pw), out.shape
    assert out.dtype == x.dtype
    assert jnp.array_equal(out, ref), "mismatch vs reference circular pad"

    # Also exercise the int-padding path (ph == pw).
    out2 = jax.block_until_ready(circular_padding_2d(x, 1))
    ref2 = jnp.pad(x, ((0, 0), (0, 0), (1, 1), (1, 1)), mode="wrap")
    assert jnp.array_equal(out2, ref2), "mismatch vs reference (int padding)"

    # Zero-padding edge case (identity).
    out3 = jax.block_until_ready(circular_padding_2d(x, 0))
    assert jnp.array_equal(out3, x), "mismatch for zero padding"

    print("KERNEL_OK")
</pallas_src>

<mosaic_0001>
module attributes {stable_mosaic.version = 11 : i64} {
  func.func @_circular_pad_kernel(%arg0: i32, %arg1: memref<1x16x16xf32, #tpu.memory_space<vmem>>, %arg2: memref<1x20x22xf32, #tpu.memory_space<vmem>>) attributes {dimension_semantics = [#tpu.dimension_semantics<parallel>], iteration_bounds = array<i64: 8>, scalar_prefetch = 0 : i64, scratch_operands = 0 : i64, tpu.core_type = #tpu.core_type<tc>, window_params = [{transform_indices = @transform_0, window_bounds = array<i64: 1, 16, 16>}, {transform_indices = @transform_1, window_bounds = array<i64: 1, 20, 22>}]} {
    %c0 = arith.constant 0 : index
    %c0_0 = arith.constant 0 : index
    %c0_1 = arith.constant 0 : index
    %0 = vector.load %arg1[%c0, %c0_0, %c0_1] : memref<1x16x16xf32, #tpu.memory_space<vmem>>, vector<1x16x16xf32>
    %1 = vector.extract_strided_slice %0 {offsets = [0, 0, 13], sizes = [1, 16, 3], strides = [1, 1, 1]} : vector<1x16x16xf32> to vector<1x16x3xf32>
    %2 = vector.extract_strided_slice %0 {offsets = [0, 0, 0], sizes = [1, 16, 3], strides = [1, 1, 1]} : vector<1x16x16xf32> to vector<1x16x3xf32>
    %3 = tpu.concatenate %1, %0, %2 in 2 : vector<1x16x3xf32>, vector<1x16x16xf32>, vector<1x16x3xf32> -> vector<1x16x22xf32>
    %4 = vector.extract_strided_slice %3 {offsets = [0, 14, 0], sizes = [1, 2, 22], strides = [1, 1, 1]} : vector<1x16x22xf32> to vector<1x2x22xf32>
    %5 = vector.extract_strided_slice %3 {offsets = [0, 0, 0], sizes = [1, 2, 22], strides = [1, 1, 1]} : vector<1x16x22xf32> to vector<1x2x22xf32>
    %6 = tpu.concatenate %4, %3, %5 in 1 : vector<1x2x22xf32>, vector<1x16x22xf32>, vector<1x2x22xf32> -> vector<1x20x22xf32>
    %c0_2 = arith.constant 0 : index
    %c0_3 = arith.constant 0 : index
    %c0_4 = arith.constant 0 : index
    %7 = vector.load %arg2[%c0_2, %c0_3, %c0_4] : memref<1x20x22xf32, #tpu.memory_space<vmem>>, vector<1x20x22xf32>
    tpu.vector_store %arg2[%c0_2, %c0_3, %c0_4], %6 {strides = array<i32>} : memref<1x20x22xf32, #tpu.memory_space<vmem>>, vector<1x20x22xf32>,
    return
  }
  func.func @transform_0(%arg0: i32) -> (i32, i32, i32) {
    %c0_i32 = arith.constant 0 : i32
    %c0_i32_0 = arith.constant 0 : i32
    %c0_i32_1 = arith.constant 0 : i32
    return %arg0, %c0_i32, %c0_i32_0 : i32, i32, i32
  }
  func.func @transform_1(%arg0: i32) -> (i32, i32, i32) {
    %c0_i32 = arith.constant 0 : i32
    %c0_i32_0 = arith.constant 0 : i32
    %c0_i32_1 = arith.constant 0 : i32
    return %arg0, %c0_i32, %c0_i32_0 : i32, i32, i32
  }
}

</mosaic_0001>

<llo_original>
// kernel: tpu_custom_call.1
$region0: #{tpu_custom_call.1}
  #allocation0 [shape = 'u32[]', space=smem, size = 0x4, offset = 0x4, fixed_abs, tag = 'smem constant byte address 0x4 - core index']
  #allocation1 [shape = 'u32[144,128]{1,0:T(1,128)}', space=vmem, size = 0x12000, scoped, tag = 'internal scratch']
  %s0 = inlined_call_operand.hbm [shape: f32[8,16,16], index: 0, kind: input, shape index: {}]
  %s1 = inlined_call_operand.vmem [shape: f32[8,20,22], index: 1, kind: output, shape index: {}]
  %s2 = sld [smem:[#allocation0]]
  $region41: #{tpu_custom_call.1} parent=0
    _
  %s4 = ssub.s32 1, %s2
  %s5 = scalar_select 0, %s4, %s2
  $region1: #{tpu_custom_call.1} parent=0
    #allocation2 [shape = 'u8[16384]{0}', space=vmem, size = 0x4000, scoped, tag = 'input window, operand 0']
    #allocation3 [shape = 's32[2]{0}', space=sflag, size = 0x8, scoped, tag = 'scoped memory for tpu_custom_call.1']
    %6 = vsyncpa [#allocation3], 0
    %s7 = scalar_lea.sflag [#allocation3], 1
    %8 = vsyncpa %s7, 0
    loop: start=0, step=1, limit=10
    $region2: #{tpu_custom_call.1} parent=1 // loop_pre_header
      _
    $region3: #{tpu_custom_call.1} parent=1 // loop_header
      %s10 = sphi 0, %s14
      %p11 = scmp.ge.s32.totalorder %s10, 10
      %s20 = sphi 0, %s22
      %s23 = sphi 0, %s20
      %s24 = sphi 0, %s23
      %s40 = sphi 0, %s24
      %s46 = sphi 0, %s48
      %s49 = sphi 0, %s46
      %s50 = sphi 0, %s49
      %s66 = sphi 0, %s50
    $region4: #{tpu_custom_call.1} parent=1 // loop_header_branch
      %13 = sbr.rel (%p11) target = $region8
    $region5: #{tpu_custom_call.1} parent=1 // loop_body
      %s15 = ssub.s32 %s10, 1
      %s16 = ssub.s32 %s10, 2
      %s17 = sadd.s32 %s10, 1
      %s18 = ssub.s32 %s10, %s17
      %p19 = scmp.eq.s32.totalorder %s18, 0
      %s21 = sadd.s32 %s20, 1
      %s22 = scalar_select %p19, %s20, %s21
      %p25 = pneg %p19
      %p26 = scmp.eq.s32.totalorder %s10, 7
      %p27 = por %p25, %p26
      %p28 = scmp.ne.s32.totalorder %s20, %s23
      %p29 = scmp.eq.s32.totalorder %s10, 0
      %p30 = por %p28, %p29
      %p31 = scmp.ne.s32.totalorder %s20, %s23
      %p32 = scmp.eq.s32.totalorder %s15, 7
      %p33 = por %p31, %p32
      %p34 = scmp.ne.s32.totalorder %s23, %s24
      %p35 = scmp.eq.s32.totalorder %s15, 0
      %p36 = por %p34, %p35
      %p37 = scmp.ne.s32.totalorder %s23, %s24
      %p38 = scmp.eq.s32.totalorder %s16, 7
      %p39 = por %p37, %p38
      %p41 = scmp.ne.s32.totalorder %s24, %s40
      %p42 = scmp.eq.s32.totalorder %s16, 0
      %p43 = por %p41, %p42
      %s44 = ssub.s32 %s10, %s17
      %p45 = scmp.eq.s32.totalorder %s44, 0
      %s47 = sadd.s32 %s46, 1
      %s48 = scalar_select %p45, %s46, %s47
      %p51 = pneg %p45
      %p52 = scmp.eq.s32.totalorder %s10, 7
      %p53 = por %p51, %p52
      %p54 = scmp.ne.s32.totalorder %s46, %s49
      %p55 = scmp.eq.s32.totalorder %s10, 0
      %p56 = por %p54, %p55
      %p57 = scmp.ne.s32.totalorder %s46, %s49
      %p58 = scmp.eq.s32.totalorder %s15, 7
      %p59 = por %p57, %p58
      %p60 = scmp.ne.s32.totalorder %s49, %s50
      %p61 = scmp.eq.s32.totalorder %s15, 0
      %p62 = por %p60, %p61
      %p63 = scmp.ne.s32.totalorder %s49, %s50
      %p64 = scmp.eq.s32.totalorder %s16, 7
      %p65 = por %p63, %p64
      %p67 = scmp.ne.s32.totalorder %s50, %s66
      %p68 = scmp.eq.s32.totalorder %s16, 0
      %p69 = por %p67, %p68
      %p70 = scmp.le.s32.totalorder 1, %s10
      %p71 = scmp.lt.s32.totalorder %s10, 9
      %p72 = pnand %p70, %p71
      %p73 = pneg %p72
      // Predicated region
      $region9: #{tpu_custom_call.1} parent=5 // pred_check
        _
      $region10: #{tpu_custom_call.1} parent=5 // pred_check_branch
        %75 = sbr.rel (%p72) target = $region12
      $region11: #{tpu_custom_call.1} parent=5 // pred_region
        %s76 = ssub.s32 %s10, 1
      $region12: #{tpu_custom_call.1} parent=5 // pred_fallthru
        _
      %p77 = scmp.lt.s32.totalorder %s10, 8
      // Predicated region
      $region13: #{tpu_custom_call.1} parent=5 // pred_check
        %p78 = pneg %p77
      $region14: #{tpu_custom_call.1} parent=5 // pred_check_branch
        %80 = sbr.rel (%p78) target = $region16
      $region15: #{tpu_custom_call.1} parent=5 // pred_region
        // Predicated region
        $region17: #{tpu_custom_call.1} parent=15 // pred_check
          %p81 = pneg %p30
        $region18: #{tpu_custom_call.1} parent=15 // pred_check_branch
          %83 = sbr.rel (%p81) target = $region20
        $region19: #{tpu_custom_call.1} parent=15 // pred_region
          %s84 = sand.u32 %s20, 1
          %s85 = scalar_lea.sflag [#allocation3], %s84
          %s86 = sand.u32 %s20, 1
          %s87 = smul.addr %s86, 16
          %s88 = scalar_lea.vmem [#allocation2], %s87
          %s90 = ssub.s32 256, 256
          %91 = vsyncadd %s85, %s90
          %s92 = smul.addr %s10, 2
          %s93 = smul.addr %s92, 128
          %s94 = scalar_lea.hbm %s0, %s93
          %s95 = sshll.u32 %s88, 4
          %s96 = int_to_ptr.vmem [resolvable:$true] %s95
          %101 = dma.hbm_to_vmem [thread:$0]  %s94, 256, %s96, %s85, 128, 128, 8
        $region20: #{tpu_custom_call.1} parent=15 // pred_fallthru
          _
      $region16: #{tpu_custom_call.1} parent=5 // pred_fallthru
        _
      %p102 = scmp.le.s32.totalorder 1, %s10
      %p103 = scmp.lt.s32.totalorder %s10, 9
      %p104 = pnand %p102, %p103
      %p105 = pneg %p104
      // Predicated region
      $region21: #{tpu_custom_call.1} parent=5 // pred_check
        _
      $region22: #{tpu_custom_call.1} parent=5 // pred_check_branch
        %107 = sbr.rel (%p104) target = $region24
      $region23: #{tpu_custom_call.1} parent=5 // pred_region
        %s108 = ssub.s32 %s10, 1
        %s109 = sand.u32 %s23, 1
        %s110 = scalar_lea.sflag [#allocation3], %s109
        %s111 = sand.u32 %s23, 1
        %s112 = smul.addr %s111, 16
        %s113 = scalar_lea.vmem [#allocation2], %s112
        // Predicated region
        $region25: #{tpu_custom_call.1} parent=23 // pred_check
          %p114 = pneg %p36
        $region26: #{tpu_custom_call.1} parent=23 // pred_check_branch
          %116 = sbr.rel (%p114) target = $region28
        $region27: #{tpu_custom_call.1} parent=23 // pred_region
          %117 = dma.done %s110, 256
        $region28: #{tpu_custom_call.1} parent=23 // pred_fallthru
          _
        %s118 = sand.u32 %s23, 1
        %s119 = scalar_lea.sflag [#allocation3], %s118
        %s120 = sand.u32 %s23, 1
        %s121 = smul.addr %s120, 16
        %s122 = scalar_lea.vmem [#allocation2], %s121
        %p123 = pneg %p36
        %p124 = pneg %p33
        %p125 = pneg %p62
        %p126 = pneg %p59
        %p127 = scmp.lt.s32.totalorder %s15, 7
        %s128 = scalar_select %p127, %s15, 7
        %s129 = smul.addr %s128, 3
        %s130 = smul.addr %s129, 8
        %s131 = scalar_lea.vmem %s1, %s130
        %p132 = scmp.lt.s32.totalorder %s15, 7
        %s133 = scalar_select %p132, %s15, 7
        %s134 = smul.addr %s133, 3
        %s135 = smul.addr %s134, 8
        %s136 = scalar_lea.vmem %s1, %s135
        %v137 = vld [vmem:[%s113] sm:$0xff]
        %v138 = vld [vmem:[%s113 + $0x8] sm:$0xff]
        %141 = vrot.lane.b32.xlu0 %v137, 115
        %v142 = vpop.permute.xlu0 %141
        %143 = vrot.lane.b32.xlu0 %v138, 115
        %v144 = vpop.permute.xlu0 %143
        %147 = vrot.lane.b32.xlu0 %v137, 3
        %v148 = vpop.permute.xlu0 %147
        %149 = vrot.lane.b32.xlu0 %v138, 3
        %v150 = vpop.permute.xlu0 %149
        %153 = vrot.lane.b32.xlu0 %v137, 19
        %v154 = vpop.permute.xlu0 %153
        %155 = vrot.lane.b32.xlu0 %v138, 19
        %v156 = vpop.permute.xlu0 %155
        %vm159 = vcmask 23552
        %v160 = vsel %vm159, %v142, %v148
        %v161 = vsel %vm159, %v144, %v150
        %vm162 = vcmask 154624
        %v163 = vsel %vm162, %v160, %v154
        %v164 = vsel %vm162, %v161, %v156
        %v166 = vrot.slane %v164, 6
        %vm169 = vcmask 1041408
        %v170 = vrot.slane %v163, 6
        %v171 = vsel %vm169, %v170, %v166
        %v174 = vsel %vm169, %v166, %v170
        %vm175 = vcmask 179200
        %176 = vst.msk [vmem:[%s136] sm:$0xff] %vm175, %v174
        %177 = vst.msk [vmem:[%s136 + $0x8] sm:$0xff] %vm175, %v171
        %vm178 = vcmask 175104
        %179 = vst.msk [vmem:[%s136 + $0x10] sm:$0xf] %vm178, %v174
        %p180 = scmp.lt.s32.totalorder %s15, 7
        %s181 = scalar_select %p180, %s15, 7
        %s182 = smul.addr %s181, 3
        %s183 = smul.addr %s182, 8
        %s184 = scalar_lea.vmem %s1, %s183
        // Predicated region
        $region29: #{tpu_custom_call.1} parent=23 // pred_check
          %p185 = pneg %p59
        $region30: #{tpu_custom_call.1} parent=23 // pred_check_branch
          %187 = sbr.rel (%p185) target = $region32
        $region31: #{tpu_custom_call.1} parent=23 // pred_region
          _
        $region32: #{tpu_custom_call.1} parent=23 // pred_fallthru
          _
      $region24: #{tpu_custom_call.1} parent=5 // pred_fallthru
        _
      %p188 = scmp.le.s32.totalorder 2, %s10
      // Predicated region
      $region33: #{tpu_custom_call.1} parent=5 // pred_check
        %p189 = pneg %p188
      $region34: #{tpu_custom_call.1} parent=5 // pred_check_branch
        %191 = sbr.rel (%p189) target = $region36
      $region35: #{tpu_custom_call.1} parent=5 // pred_region
        %s192 = ssub.s32 %s10, 2
        // Predicated region
        $region37: #{tpu_custom_call.1} parent=35 // pred_check
          %p193 = pneg %p65
        $region38: #{tpu_custom_call.1} parent=35 // pred_check_branch
          %195 = sbr.rel (%p193) target = $region40
        $region39: #{tpu_custom_call.1} parent=35 // pred_region
          %p196 = scmp.lt.s32.totalorder %s16, 7
          %s197 = scalar_select %p196, %s16, 7
          %s198 = smul.addr %s197, 3
          %s199 = smul.addr %s198, 8
          %s200 = scalar_lea.vmem %s1, %s199
        $region40: #{tpu_custom_call.1} parent=35 // pred_fallthru
          _
      $region36: #{tpu_custom_call.1} parent=5 // pred_fallthru
        _
    $region6: #{tpu_custom_call.1} parent=1 // loop_footer
      %s14 = sadd.s32 1, %s10
    $region7: #{tpu_custom_call.1} parent=1 // loop_footer_branch
      %9 = sbr.rel target = $region3
    $region8: #{tpu_custom_call.1} parent=1 // loop_exit
      _
    %201 = vsyncpa [#allocation3], 1
    %s202 = scalar_lea.sflag [#allocation3], 1
    %203 = vsyncpa %s202, 1

</llo_original>
